<compile_context>
chip_gen: v7x
topology: tpu7x:2x2x1
jax: 0.10.0
libtpu: 0.0.40
codegen_flags: <defaults>
</compile_context>

<pallas_src>
import math

import jax
import jax.numpy as jnp
from jax import lax
from jax.experimental import pallas as pl
from jax.experimental.pallas import tpu as pltpu


# ----------------------------------------------------------------------------
# Layout constants.
# ----------------------------------------------------------------------------
HIDDEN = 128           # lane width of every hidden layer
OUT_ROWS = 8           # sublane rows of the transposed output slab (out_dim <= 8)

# f32 mini-slab (first-layer weights + row biases), 24 x 128
R_WS = 0               # rows [0, 8)  : state_net weight (state_dim rows, cols 0:64)
R_WI = 8               # rows [8, 16) : input_net weight (input_dim rows, cols 64:128)
R_B0 = 16              # row 16       : bias of fused first layer  (concat(bs, bi))
R_B1 = 17              # row 17       : bias of layer_1
FP_ROWS = 24

# bf16 weight-slab row offsets (all multiples of 16 -> bf16 sublane-pack aligned)
W1_LO, W1_HI = 0, 128          # layer_1            (128,128), stored [in, out]
W2T_LO, W2T_HI = 128, 256      # layer_2 transposed (128,128), stored [out(pad), in]
W3T_LO, W3T_HI = 256, 272      # layer_3 transposed ( 16,128), [out(pad), in]; lane 127 = b3
W_ROWS = W3T_HI                # 272


def _make_kernel(state_dim, input_dim):
    def kernel(s_ref, i_ref, fp_ref, w_ref, bcol_ref, out_ref):
        """s_ref:(TB,sd) i_ref:(TB,id) fp_ref:(24,128)f32 w_ref:(272,128)bf16
        bcol_ref:(128,1)f32 out_ref:(8,TB)f32."""
        s = s_ref[...]                                            # (TB, sd)  f32
        t = i_ref[...]                                            # (TB, id)  f32

        # Fused state_net + input_net: two tiny-K dots into the 128-wide hidden.
        h0 = (jnp.dot(s, fp_ref[R_WS:R_WS + state_dim, :],
                      preferred_element_type=jnp.float32)
              + jnp.dot(t, fp_ref[R_WI:R_WI + input_dim, :],
                        preferred_element_type=jnp.float32)
              + fp_ref[R_B0:R_B0 + 1, :])
        h0 = jnp.maximum(h0, 0.0).astype(jnp.bfloat16)            # (TB, 128) == [h_s | h_i]

        # layer_1 (batch-major NN matmul, bf16 MXU, f32 accumulate)
        h1 = jnp.maximum(
            jnp.dot(h0, w_ref[W1_LO:W1_HI, :],
                    preferred_element_type=jnp.float32)
            + fp_ref[R_B1:R_B1 + 1, :], 0.0).astype(jnp.bfloat16)  # (TB, 128)

        # layer_2, produced feature-major: h2T = relu(W2T . h1^T + b2_col)
        # expressed as the NT contraction (contract the lane dims of both operands).
        # Row 127 of W2T is zero and b2_col[127] = 1, pinning h2T row 127 to 1.0
        # (carries the layer_3 bias through the next matmul).
        h2t = jnp.maximum(
            lax.dot_general(w_ref[W2T_LO:W2T_HI, :], h1,
                            dimension_numbers=(((1,), (1,)), ((), ())),
                            preferred_element_type=jnp.float32)
            + bcol_ref[...], 0.0).astype(jnp.bfloat16)             # (128, TB)

        # layer_3 (feature-major NN matmul) + tanh; bias folded into lane 127 of W3T.
        o16 = jnp.tanh(
            jnp.dot(w_ref[W3T_LO:W3T_HI, :], h2t,
                    preferred_element_type=jnp.float32))           # (16, TB)

        # Lane-dense transposed writeback: only 8 f32 rows (32 B / batch element).
        out_ref[...] = o16[0:OUT_ROWS, :].astype(out_ref.dtype)

    return kernel


def _round_up(x, m):
    return ((x + m - 1) // m) * m


def _pick_tile(B, tile_b):
    """Pick (batch_tile, padded_batch). Multi-tile path keeps >=2 tiles (v7x: 2 TCs)
    and lane-multiple (128) tiles so the transposed output blocks stay legal."""
    bp8 = _round_up(B, 8)
    if bp8 <= 256:                       # tiny batch: single block == full batch
        return bp8, bp8
    tile_b = max(128, (tile_b // 128) * 128)
    tb = min(tile_b, _round_up((B + 1) // 2, 128))
    return tb, _round_up(B, tb)


def pack_params(params, state_dim=3, input_dim=3, out_dim=3):
    """Pack the 10 PyTorch-style tensors (weights stored [in, out]) into:
       fp_slab (24,128) f32, w_slab (272,128) bf16, b_col (128,1) f32."""
    assert state_dim <= 8 and input_dim <= 8 and out_dim <= OUT_ROWS
    ws, bs, wi, bi, w1, b1, w2, b2, w3, b3 = params
    f32 = jnp.float32

    fp = jnp.zeros((FP_ROWS, HIDDEN), f32)
    fp = fp.at[R_WS:R_WS + state_dim, 0:64].set(ws.astype(f32))
    fp = fp.at[R_WI:R_WI + input_dim, 64:128].set(wi.astype(f32))
    fp = fp.at[R_B0, :].set(jnp.concatenate([bs.reshape(-1), bi.reshape(-1)]).astype(f32))
    fp = fp.at[R_B1, :].set(b1.reshape(-1).astype(f32))

    w2t = jnp.zeros((128, HIDDEN), f32).at[0:64, :].set(w2.T.astype(f32))
    w3t = jnp.zeros((16, HIDDEN), f32)
    w3t = w3t.at[0:out_dim, 0:64].set(w3.T.astype(f32))
    w3t = w3t.at[0:out_dim, 127].set(b3.reshape(-1).astype(f32))   # fold b3 into lane 127
    w_slab = jnp.concatenate([w1.astype(f32), w2t, w3t], axis=0).astype(jnp.bfloat16)

    b_col = jnp.zeros((HIDDEN, 1), f32)
    b_col = b_col.at[0:64, 0].set(b2.reshape(-1).astype(f32))
    b_col = b_col.at[127, 0].set(1.0)                              # pins h2T row 127 to 1.0
    return fp, w_slab, b_col


def rnn_net_forward(state, inp, packed, out_dim=3, tile_b=512):
    """state: [B, state_dim], inp: [B, input_dim] -> [B, out_dim]."""
    fp_slab, w_slab, b_col = packed
    B, sd = state.shape
    idim = inp.shape[1]
    assert out_dim <= OUT_ROWS

    tb, b_pad = _pick_tile(B, tile_b)
    state = state.astype(jnp.float32)
    inp = inp.astype(jnp.float32)
    if b_pad != B:
        state = jnp.pad(state, ((0, b_pad - B), (0, 0)))
        inp = jnp.pad(inp, ((0, b_pad - B), (0, 0)))

    grid = (b_pad // tb,)
    out = pl.pallas_call(
        _make_kernel(sd, idim),
        out_shape=jax.ShapeDtypeStruct((OUT_ROWS, b_pad), jnp.float32),
        grid=grid,
        in_specs=[
            pl.BlockSpec((tb, sd), lambda i: (i, 0)),            # state: batch-tiled
            pl.BlockSpec((tb, idim), lambda i: (i, 0)),          # input: batch-tiled
            pl.BlockSpec((FP_ROWS, HIDDEN), lambda i: (0, 0)),   # f32 mini-slab: resident
            pl.BlockSpec((W_ROWS, HIDDEN), lambda i: (0, 0)),    # bf16 weights: resident
            pl.BlockSpec((HIDDEN, 1), lambda i: (0, 0)),         # b2 column:    resident
        ],
        out_specs=pl.BlockSpec((OUT_ROWS, tb), lambda i: (0, i)),  # transposed, lane-dense
        compiler_params=pltpu.CompilerParams(
            dimension_semantics=("parallel",)),
    )(state, inp, fp_slab, w_slab, b_col)

    return out[:out_dim, :B].T


# ----------------------------------------------------------------------------
# Init + pure-JAX f32 reference (mirrors the PyTorch module exactly).
# ----------------------------------------------------------------------------
def init_params(key, state_dim=3, input_dim=3, out_dim=3):
    """PyTorch nn.Linear-style init; weights stored [in_features, out_features]."""
    def linear(k, fan_in, fan_out):
        kw, kb = jax.random.split(k)
        bound = 1.0 / math.sqrt(fan_in)
        w = jax.random.uniform(kw, (fan_in, fan_out), jnp.float32, -bound, bound)
        b = jax.random.uniform(kb, (1, fan_out), jnp.float32, -bound, bound)
        return w, b

    ks = jax.random.split(key, 5)
    ws, bs = linear(ks[0], state_dim, 64)   # state_net
    wi, bi = linear(ks[1], input_dim, 64)   # input_net
    w1, b1 = linear(ks[2], 128, 128)        # layer_1
    w2, b2 = linear(ks[3], 128, 64)         # layer_2
    w3, b3 = linear(ks[4], 64, out_dim)     # layer_3
    return (ws, bs, wi, bi, w1, b1, w2, b2, w3, b3)


def reference_forward(state, inp, params):
    (ws, bs, wi, bi, w1, b1, w2, b2, w3, b3) = params
    h_s = jax.nn.relu(state @ ws + bs)
    h_i = jax.nn.relu(inp @ wi + bi)
    h = jnp.concatenate([h_s, h_i], axis=1)
    h1 = jax.nn.relu(h @ w1 + b1)
    h2 = jax.nn.relu(h1 @ w2 + b2)
    return jnp.tanh(h2 @ w3 + b3)


if __name__ == "__main__":
    key = jax.random.PRNGKey(0)
    k_params, k_state, k_input = jax.random.split(key, 3)

    state_dim, input_dim, out_dim = 3, 3, 3
    params = init_params(k_params, state_dim, input_dim, out_dim)
    packed = pack_params(params, state_dim, input_dim, out_dim)

    # case 1: tiny batch (single grid step, block == full batch)
    B = 8
    s1 = jax.random.normal(k_state, (B, state_dim), jnp.float32)
    i1 = jax.random.normal(k_input, (B, input_dim), jnp.float32)
    out1 = jax.block_until_ready(rnn_net_forward(s1, i1, packed, out_dim))
    ref1 = reference_forward(s1, i1, params)
    assert out1.shape == (B, out_dim), out1.shape
    assert jnp.allclose(out1, ref1, atol=5e-2, rtol=0.0), "mismatch (B=8)"

    # case 2: larger batch -> two 384-row tiles (exercises tiling, padding, 2-TC split)
    B2 = 600
    s2 = jax.random.normal(jax.random.fold_in(k_state, 1), (B2, state_dim), jnp.float32)
    i2 = jax.random.normal(jax.random.fold_in(k_input, 1), (B2, input_dim), jnp.float32)
    out2 = jax.block_until_ready(rnn_net_forward(s2, i2, packed, out_dim))
    ref2 = reference_forward(s2, i2, params)
    assert out2.shape == (B2, out_dim), out2.shape
    assert jnp.allclose(out2, ref2, atol=5e-2, rtol=0.0), "mismatch (B=600)"

    print("KERNEL_OK")
</pallas_src>

<mosaic_0001>
module attributes {stable_mosaic.version = 11 : i64} {
  func.func @kernel(%arg0: i32, %arg1: memref<8x3xf32, #tpu.memory_space<vmem>>, %arg2: memref<8x3xf32, #tpu.memory_space<vmem>>, %arg3: memref<24x128xf32, #tpu.memory_space<vmem>>, %arg4: memref<272x128xbf16, #tpu.memory_space<vmem>>, %arg5: memref<128x1xf32, #tpu.memory_space<vmem>>, %arg6: memref<8x8xf32, #tpu.memory_space<vmem>>) attributes {dimension_semantics = [#tpu.dimension_semantics<parallel>], iteration_bounds = array<i64: 1>, scalar_prefetch = 0 : i64, scratch_operands = 0 : i64, tpu.core_type = #tpu.core_type<tc>, window_params = [{transform_indices = @transform_0, window_bounds = array<i64: 8, 3>}, {transform_indices = @transform_1, window_bounds = array<i64: 8, 3>}, {pipeline_mode = #tpu.pipeline_mode<synchronous>, transform_indices = @transform_2, window_bounds = array<i64: 24, 128>}, {pipeline_mode = #tpu.pipeline_mode<synchronous>, transform_indices = @transform_3, window_bounds = array<i64: 272, 128>}, {pipeline_mode = #tpu.pipeline_mode<synchronous>, transform_indices = @transform_4, window_bounds = array<i64: 128, 1>}, {transform_indices = @transform_5, window_bounds = array<i64: 8, 8>}]} {
    %c0 = arith.constant 0 : index
    %c0_0 = arith.constant 0 : index
    %0 = vector.load %arg1[%c0, %c0_0] : memref<8x3xf32, #tpu.memory_space<vmem>>, vector<8x3xf32>
    %c0_1 = arith.constant 0 : index
    %c0_2 = arith.constant 0 : index
    %1 = vector.load %arg2[%c0_1, %c0_2] : memref<8x3xf32, #tpu.memory_space<vmem>>, vector<8x3xf32>
    %c0_3 = arith.constant 0 : index
    %c0_4 = arith.constant 0 : index
    %2 = vector.load %arg3[%c0_3, %c0_4] : memref<24x128xf32, #tpu.memory_space<vmem>>, vector<3x128xf32>
    %cst = arith.constant dense<0.000000e+00> : vector<8x128xf32>
    %3 = tpu.matmul %0, %2, %cst {dimension_numbers = #tpu.dot_dimension_numbers<[1], [0], [0], [1], [0, 0, 1, 1], [], []>} : vector<8x3xf32>, vector<3x128xf32>, vector<8x128xf32> -> vector<8x128xf32>
    %c8 = arith.constant 8 : index
    %c0_5 = arith.constant 0 : index
    %4 = vector.load %arg3[%c8, %c0_5] : memref<24x128xf32, #tpu.memory_space<vmem>>, vector<3x128xf32>
    %cst_6 = arith.constant dense<0.000000e+00> : vector<8x128xf32>
    %5 = tpu.matmul %1, %4, %cst_6 {dimension_numbers = #tpu.dot_dimension_numbers<[1], [0], [0], [1], [0, 0, 1, 1], [], []>} : vector<8x3xf32>, vector<3x128xf32>, vector<8x128xf32> -> vector<8x128xf32>
    %6 = arith.addf %3, %5 : vector<8x128xf32>
    %c16 = arith.constant 16 : index
    %c0_7 = arith.constant 0 : index
    %7 = vector.load %arg3[%c16, %c0_7] : memref<24x128xf32, #tpu.memory_space<vmem>>, vector<1x128xf32>
    %8 = vector.broadcast %7 : vector<1x128xf32> to vector<8x128xf32>
    %9 = arith.addf %6, %8 : vector<8x128xf32>
    %cst_8 = arith.constant 0.000000e+00 : f32
    %10 = vector.broadcast %cst_8 : f32 to vector<8x128xf32>
    %11 = arith.maximumf %9, %10 : vector<8x128xf32>
    %12 = arith.truncf %11 : vector<8x128xf32> to vector<8x128xbf16>
    %c0_9 = arith.constant 0 : index
    %c0_10 = arith.constant 0 : index
    %13 = vector.load %arg4[%c0_9, %c0_10] : memref<272x128xbf16, #tpu.memory_space<vmem>>, vector<128x128xbf16>
    %cst_11 = arith.constant dense<0.000000e+00> : vector<8x128xf32>
    %14 = tpu.matmul %12, %13, %cst_11 {dimension_numbers = #tpu.dot_dimension_numbers<[1], [0], [0], [1], [0, 0, 1, 1], [], []>} : vector<8x128xbf16>, vector<128x128xbf16>, vector<8x128xf32> -> vector<8x128xf32>
    %c17 = arith.constant 17 : index
    %c0_12 = arith.constant 0 : index
    %15 = vector.load %arg3[%c17, %c0_12] : memref<24x128xf32, #tpu.memory_space<vmem>>, vector<1x128xf32>
    %16 = vector.broadcast %15 : vector<1x128xf32> to vector<8x128xf32>
    %17 = arith.addf %14, %16 : vector<8x128xf32>
    %cst_13 = arith.constant 0.000000e+00 : f32
    %18 = vector.broadcast %cst_13 : f32 to vector<8x128xf32>
    %19 = arith.maximumf %17, %18 : vector<8x128xf32>
    %20 = arith.truncf %19 : vector<8x128xf32> to vector<8x128xbf16>
    %c128 = arith.constant 128 : index
    %c0_14 = arith.constant 0 : index
    %21 = vector.load %arg4[%c128, %c0_14] : memref<272x128xbf16, #tpu.memory_space<vmem>>, vector<128x128xbf16>
    %cst_15 = arith.constant dense<0.000000e+00> : vector<128x8xf32>
    %22 = tpu.matmul %21, %20, %cst_15 {dimension_numbers = #tpu.dot_dimension_numbers<[1], [1], [0], [0], [0, 0, 1, 0], [], []>} : vector<128x128xbf16>, vector<8x128xbf16>, vector<128x8xf32> -> vector<128x8xf32>
    %c0_16 = arith.constant 0 : index
    %c0_17 = arith.constant 0 : index
    %23 = vector.load %arg5[%c0_16, %c0_17] : memref<128x1xf32, #tpu.memory_space<vmem>>, vector<128x1xf32>
    %24 = vector.broadcast %23 : vector<128x1xf32> to vector<128x8xf32>
    %25 = arith.addf %22, %24 : vector<128x8xf32>
    %cst_18 = arith.constant 0.000000e+00 : f32
    %26 = vector.broadcast %cst_18 : f32 to vector<128x8xf32>
    %27 = arith.maximumf %25, %26 : vector<128x8xf32>
    %28 = arith.truncf %27 : vector<128x8xf32> to vector<128x8xbf16>
    %c256 = arith.constant 256 : index
    %c0_19 = arith.constant 0 : index
    %29 = vector.load %arg4[%c256, %c0_19] : memref<272x128xbf16, #tpu.memory_space<vmem>>, vector<16x128xbf16>
    %cst_20 = arith.constant dense<0.000000e+00> : vector<16x8xf32>
    %30 = tpu.matmul %29, %28, %cst_20 {dimension_numbers = #tpu.dot_dimension_numbers<[1], [0], [0], [1], [0, 0, 1, 1], [], []>} : vector<16x128xbf16>, vector<128x8xbf16>, vector<16x8xf32> -> vector<16x8xf32>
    %31 = math.tanh %30 : vector<16x8xf32>
    %32 = vector.extract_strided_slice %31 {offsets = [0, 0], sizes = [8, 8], strides = [1, 1]} : vector<16x8xf32> to vector<8x8xf32>
    %c0_21 = arith.constant 0 : index
    %c0_22 = arith.constant 0 : index
    %33 = vector.load %arg6[%c0_21, %c0_22] : memref<8x8xf32, #tpu.memory_space<vmem>>, vector<8x8xf32>
    tpu.vector_store %arg6[%c0_21, %c0_22], %32 {strides = array<i32>} : memref<8x8xf32, #tpu.memory_space<vmem>>, vector<8x8xf32>,
    return
  }
  func.func @transform_0(%arg0: i32) -> (i32, i32) {
    %c0_i32 = arith.constant 0 : i32
    %c0_i32_0 = arith.constant 0 : i32
    return %arg0, %c0_i32 : i32, i32
  }
  func.func @transform_1(%arg0: i32) -> (i32, i32) {
    %c0_i32 = arith.constant 0 : i32
    %c0_i32_0 = arith.constant 0 : i32
    return %arg0, %c0_i32 : i32, i32
  }
  func.func @transform_2(%arg0: i32) -> (i32, i32) {
    %c0_i32 = arith.constant 0 : i32
    %c0_i32_0 = arith.constant 0 : i32
    %c0_i32_1 = arith.constant 0 : i32
    return %c0_i32, %c0_i32_0 : i32, i32
  }
  func.func @transform_3(%arg0: i32) -> (i32, i32) {
    %c0_i32 = arith.constant 0 : i32
    %c0_i32_0 = arith.constant 0 : i32
    %c0_i32_1 = arith.constant 0 : i32
    return %c0_i32, %c0_i32_0 : i32, i32
  }
  func.func @transform_4(%arg0: i32) -> (i32, i32) {
    %c0_i32 = arith.constant 0 : i32
    %c0_i32_0 = arith.constant 0 : i32
    %c0_i32_1 = arith.constant 0 : i32
    return %c0_i32, %c0_i32_0 : i32, i32
  }
  func.func @transform_5(%arg0: i32) -> (i32, i32) {
    %c0_i32 = arith.constant 0 : i32
    %c0_i32_0 = arith.constant 0 : i32
    return %c0_i32, %arg0 : i32, i32
  }
}

</mosaic_0001>

<llo_original>
// kernel: tpu_custom_call.1
$region0: #{tpu_custom_call.1}
  #allocation0 [shape = 'u32[]', space=smem, size = 0x4, offset = 0x4, fixed_abs, tag = 'smem constant byte address 0x4 - core index']
  #allocation1 [shape = 'u32[144,128]{1,0:T(1,128)}', space=vmem, size = 0x12000, scoped, tag = 'internal scratch']
  %s0 = inlined_call_operand.vmem [shape: f32[8,3], index: 0, kind: input, shape index: {}]
  %s1 = inlined_call_operand.vmem [shape: f32[8,3], index: 1, kind: input, shape index: {}]
  %s2 = inlined_call_operand.vmem [shape: f32[24,128], index: 2, kind: input, shape index: {}]
  %s3 = inlined_call_operand.vmem [shape: bf16[272,128], index: 3, kind: input, shape index: {}]
  %s4 = inlined_call_operand.vmem [shape: f32[128,1], index: 4, kind: input, shape index: {}]
  %s5 = inlined_call_operand.hbm [shape: f32[8,8], index: 5, kind: output, shape index: {}]
  %s6 = sld [smem:[#allocation0]]
  $region30: #{tpu_custom_call.1} parent=0
    _
  %s8 = ssub.s32 1, %s6
  %s9 = scalar_select 0, %s8, %s6
  $region1: #{tpu_custom_call.1} parent=0
    #allocation2 [shape = 'u8[4096]{0}', space=vmem, size = 0x1000, scoped, tag = 'output window, operand 0, single buffered']
    #allocation3 [shape = 's32[1]{0}', space=sflag, size = 0x4, scoped, tag = 'scoped memory for tpu_custom_call.1']
    %10 = vsyncpa [#allocation3], 0
    // Predicated region
    $region2: #{tpu_custom_call.1} parent=1 // pred_check
      _
    $region3: #{tpu_custom_call.1} parent=1 // pred_check_branch
      %12 = sbr.rel (0) target = $region5
    $region4: #{tpu_custom_call.1} parent=1 // pred_region
      _
    $region5: #{tpu_custom_call.1} parent=1 // pred_fallthru
      _
    // Predicated region
    $region6: #{tpu_custom_call.1} parent=1 // pred_check
      _
    $region7: #{tpu_custom_call.1} parent=1 // pred_check_branch
      %14 = sbr.rel (0) target = $region9
    $region8: #{tpu_custom_call.1} parent=1 // pred_region
      _
    $region9: #{tpu_custom_call.1} parent=1 // pred_fallthru
      _
    // Predicated region
    $region10: #{tpu_custom_call.1} parent=1 // pred_check
      _
    $region11: #{tpu_custom_call.1} parent=1 // pred_check_branch
      %16 = sbr.rel (0) target = $region13
    $region12: #{tpu_custom_call.1} parent=1 // pred_region
      _
    $region13: #{tpu_custom_call.1} parent=1 // pred_fallthru
      _
    // Predicated region
    $region14: #{tpu_custom_call.1} parent=1 // pred_check
      _
    $region15: #{tpu_custom_call.1} parent=1 // pred_check_branch
      %18 = sbr.rel (0) target = $region17
    $region16: #{tpu_custom_call.1} parent=1 // pred_region
      _
    $region17: #{tpu_custom_call.1} parent=1 // pred_fallthru
      _
    // Predicated region
    $region18: #{tpu_custom_call.1} parent=1 // pred_check
      _
    $region19: #{tpu_custom_call.1} parent=1 // pred_check_branch
      %20 = sbr.rel (0) target = $region21
    $region20: #{tpu_custom_call.1} parent=1 // pred_region
      _
    $region21: #{tpu_custom_call.1} parent=1 // pred_fallthru
      _
    %v22 = vld [vmem:[%s0] sm:$0xff]
    %v23 = vld [vmem:[%s1] sm:$0xff]
    %v24 = vld [vmem:[%s2] sm:$0x7]
    %v25 = vld [vmem:[%s2 + $0x8] sm:$0x7]
    %vm26 = vcmask 23552
    %v28 = vsel %vm26, %v23, 0
    %vm30 = vcmask 1042432
    %v32 = vsel %vm30, %v25, 0
    %34 = vmatprep.subr.mxu0 0.0
    %35 = vmatpush1.msra.mxu0 %v32
    %36 = vmatprep.subr.mxu0 0.0
    %37 = vmatpush1.msra.mxu0 0.0
    %38 = vmatprep.subr.mxu0 0.0
    %39 = vmatpush1.msra.mxu0 0.0
    %40 = vmatprep.subr.mxu0 0.0
    %41 = vmatpush1.msra.mxu0 0.0
    %42 = vmatprep.subr.mxu0 0.0
    %43 = vmatpush1.msra.mxu0 0.0
    %44 = vmatprep.subr.mxu0 0.0
    %45 = vmatpush1.msra.mxu0 0.0
    %46 = vmatprep.subr.mxu0 0.0
    %47 = vmatpush1.msra.mxu0 0.0
    %48 = vmatprep.subr.mxu0 0.0
    %49 = vmatpush1.msra.mxu0 0.0
    %50 = vmatprep.subr.mxu0 0.0
    %51 = vmatpush1.msra.mxu0 0.0
    %52 = vmatprep.subr.mxu0 0.0
    %53 = vmatpush1.msra.mxu0 0.0
    %54 = vmatprep.subr.mxu0 0.0
    %55 = vmatpush1.msra.mxu0 0.0
    %56 = vmatprep.subr.mxu0 0.0
    %57 = vmatpush1.msra.mxu0 0.0
    %58 = vmatprep.subr.mxu0 0.0
    %59 = vmatpush1.msra.mxu0 0.0
    %60 = vmatprep.subr.mxu0 0.0
    %61 = vmatpush1.msra.mxu0 0.0
    %62 = vmatprep.subr.mxu0 0.0
    %63 = vmatpush1.msra.mxu0 0.0
    %64 = vmatprep.subr.mxu0 0.0
    %65 = vmatpush1.msra.mxu0 0.0
    %66 = vmatprep.subr.mxu0 0.0
    %67 = vmatpush1.msra.mxu0 0.0
    %68 = vmatprep.subr.mxu0 0.0
    %69 = vmatpush1.msra.mxu0 0.0
    %70 = vmatprep.subr.mxu0 0.0
    %71 = vmatpush1.msra.mxu0 0.0
    %72 = vmatprep.subr.mxu0 0.0
    %73 = vmatpush1.msra.mxu0 0.0
    %74 = vmatprep.subr.mxu0 0.0
    %75 = vmatpush1.msra.mxu0 0.0
    %76 = vmatprep.subr.mxu0 0.0
    %77 = vmatpush1.msra.mxu0 0.0
    %78 = vmatprep.subr.mxu0 0.0
    %79 = vmatpush1.msra.mxu0 0.0
    %80 = vmatprep.subr.mxu0 0.0
    %81 = vmatpush1.msra.mxu0 0.0
    %82 = vmatprep.subr.mxu0 0.0
    %83 = vmatpush1.msra.mxu0 0.0
    %84 = vmatprep.subr.mxu0 0.0
    %85 = vmatpush1.msra.mxu0 0.0
    %86 = vmatprep.subr.mxu0 0.0
    %87 = vmatpush1.msra.mxu0 0.0
    %88 = vmatprep.subr.mxu0 0.0
    %89 = vmatpush1.msra.mxu0 0.0
    %90 = vmatprep.subr.mxu0 0.0
    %91 = vmatpush1.msra.mxu0 0.0
    %92 = vmatprep.subr.mxu0 0.0
    %93 = vmatpush1.msra.mxu0 0.0
    %94 = vmatprep.subr.mxu0 0.0
    %95 = vmatpush1.msra.mxu0 0.0
    %96 = vmatprep.subr.mxu0 0.0
    %97 = vmatpush1.msra.mxu0 0.0
    %98 = vmatprep.mubr.f32.mxu0 0.0
    %99 = vmatmul.mubr.f32.gmra.mrb[0].mxu0 %v28
    %v100 = vpop.f32.mrb[0].mxu0
    %v101 = vadd.f32 0.0, %v100
    %v102 = vpop.f32.mrb[0].mxu0
    %103 = vdwg.mxu0
    %v105 = vsel %vm26, %v22, 0
    %v108 = vsel %vm30, %v24, 0
    %110 = vmatprep.subr.mxu0 0.0
    %111 = vmatpush1.msra.mxu0 %v108
    %112 = vmatprep.subr.mxu0 0.0
    %113 = vmatpush1.msra.mxu0 0.0
    %114 = vmatprep.subr.mxu0 0.0
    %115 = vmatpush1.msra.mxu0 0.0
    %116 = vmatprep.subr.mxu0 0.0
    %117 = vmatpush1.msra.mxu0 0.0
    %118 = vmatprep.subr.mxu0 0.0
    %119 = vmatpush1.msra.mxu0 0.0
    %120 = vmatprep.subr.mxu0 0.0
    %121 = vmatpush1.msra.mxu0 0.0
    %122 = vmatprep.subr.mxu0 0.0
    %123 = vmatpush1.msra.mxu0 0.0
    %124 = vmatprep.subr.mxu0 0.0
    %125 = vmatpush1.msra.mxu0 0.0
    %126 = vmatprep.subr.mxu0 0.0
    %127 = vmatpush1.msra.mxu0 0.0
    %128 = vmatprep.subr.mxu0 0.0
    %129 = vmatpush1.msra.mxu0 0.0
    %130 = vmatprep.subr.mxu0 0.0
    %131 = vmatpush1.msra.mxu0 0.0
    %132 = vmatprep.subr.mxu0 0.0
    %133 = vmatpush1.msra.mxu0 0.0
    %134 = vmatprep.subr.mxu0 0.0
    %135 = vmatpush1.msra.mxu0 0.0
    %136 = vmatprep.subr.mxu0 0.0
    %137 = vmatpush1.msra.mxu0 0.0
    %138 = vmatprep.subr.mxu0 0.0
    %139 = vmatpush1.msra.mxu0 0.0
    %140 = vmatprep.subr.mxu0 0.0
    %141 = vmatpush1.msra.mxu0 0.0
    %142 = vmatprep.subr.mxu0 0.0
    %143 = vmatpush1.msra.mxu0 0.0
    %144 = vmatprep.subr.mxu0 0.0
    %145 = vmatpush1.msra.mxu0 0.0
    %146 = vmatprep.subr.mxu0 0.0
    %147 = vmatpush1.msra.mxu0 0.0
    %148 = vmatprep.subr.mxu0 0.0
    %149 = vmatpush1.msra.mxu0 0.0
    %150 = vmatprep.subr.mxu0 0.0
    %151 = vmatpush1.msra.mxu0 0.0
    %152 = vmatprep.subr.mxu0 0.0
    %153 = vmatpush1.msra.mxu0 0.0
    %154 = vmatprep.subr.mxu0 0.0
    %155 = vmatpush1.msra.mxu0 0.0
    %156 = vmatprep.subr.mxu0 0.0
    %157 = vmatpush1.msra.mxu0 0.0
    %158 = vmatprep.subr.mxu0 0.0
    %159 = vmatpush1.msra.mxu0 0.0
    %160 = vmatprep.subr.mxu0 0.0
    %161 = vmatpush1.msra.mxu0 0.0
    %162 = vmatprep.subr.mxu0 0.0
    %163 = vmatpush1.msra.mxu0 0.0
    %164 = vmatprep.subr.mxu0 0.0
    %165 = vmatpush1.msra.mxu0 0.0
    %166 = vmatprep.subr.mxu0 0.0
    %167 = vmatpush1.msra.mxu0 0.0
    %168 = vmatprep.subr.mxu0 0.0
    %169 = vmatpush1.msra.mxu0 0.0
    %170 = vmatprep.subr.mxu0 0.0
    %171 = vmatpush1.msra.mxu0 0.0
    %172 = vmatprep.subr.mxu0 0.0
    %173 = vmatpush1.msra.mxu0 0.0
    %174 = vmatprep.mubr.f32.mxu0 0.0
    %175 = vmatmul.mubr.f32.gmra.mrb[0].mxu0 %v105
    %v176 = vpop.f32.mrb[0].mxu0
    %v177 = vadd.f32 %v101, %v176
    %v178 = vpop.f32.mrb[0].mxu0
    %179 = vdwg.mxu0
    %v180 = vld [vmem:[%s2 + $0x10] sm:$0x1]
    %v181 = vlaneseq
    %v182 = vshrl.u32 %v181, 7
    %v183 = vsub.s32 0, %v182
    %v184 = vrot.slane %v180, %v183
    %v185 = vadd.f32 %v177, %v184
    %v186 = vmax.f32 %v185, 0.0
    %v187 = vpack.c.bf16 %v186, %v186
    %v188 = vld [vmem:[%s3] sm:$0xf]
    %v189 = vld [vmem:[%s3 + $0x4] sm:$0xf]
    %v190 = vld [vmem:[%s3 + $0x8] sm:$0xf]
    %v191 = vld [vmem:[%s3 + $0xc] sm:$0xf]
    %v192 = vld [vmem:[%s3 + $0x10] sm:$0xf]
    %v193 = vld [vmem:[%s3 + $0x14] sm:$0xf]
    %v194 = vld [vmem:[%s3 + $0x18] sm:$0xf]
    %v195 = vld [vmem:[%s3 + $0x1c] sm:$0xf]
    %v196 = vld [vmem:[%s3 + $0x20] sm:$0xf]
    %v197 = vld [vmem:[%s3 + $0x24] sm:$0xf]
    %v198 = vld [vmem:[%s3 + $0x28] sm:$0xf]
    %v199 = vld [vmem:[%s3 + $0x2c] sm:$0xf]
    %v200 = vld [vmem:[%s3 + $0x30] sm:$0xf]
    %v201 = vld [vmem:[%s3 + $0x34] sm:$0xf]
    %v202 = vld [vmem:[%s3 + $0x38] sm:$0xf]
    %v203 = vld [vmem:[%s3 + $0x3c] sm:$0xf]
    %v204 = vld [vmem:[%s2 + $0x11] sm:$0x1]
    %v205 = vlaneseq
    %v206 = vshrl.u32 %v205, 7
    %v207 = vsub.s32 0, %v206
    %v208 = vrot.slane %v204, %v207
    %v225 = vunpack.c.l.b16 %v188
    %v226 = vunpack.c.l.b16 %v189
    %v227 = vunpack.c.l.b16 %v190
    %v228 = vunpack.c.l.b16 %v191
    %v229 = vunpack.c.l.b16 %v192
    %v230 = vunpack.c.l.b16 %v193
    %v231 = vunpack.c.l.b16 %v194
    %v232 = vunpack.c.l.b16 %v195
    %v233 = vunpack.c.l.b16 %v196
    %v234 = vunpack.c.l.b16 %v197
    %v235 = vunpack.c.l.b16 %v198
    %v236 = vunpack.c.l.b16 %v199
    %v237 = vunpack.c.l.b16 %v200
    %v238 = vunpack.c.l.b16 %v201
    %v239 = vunpack.c.l.b16 %v202
    %v240 = vunpack.c.l.b16 %v203
    %v241 = vpack.c.b16 %v226, %v225
    %v242 = vpack.c.b16 %v228, %v227
    %v243 = vpack.c.b16 %v230, %v229
    %v244 = vpack.c.b16 %v232, %v231
    %v245 = vpack.c.b16 %v234, %v233
    %v246 = vpack.c.b16 %v236, %v235
    %v247 = vpack.c.b16 %v238, %v237
    %v248 = vpack.c.b16 %v240, %v239
    %257 = vmatprep.subr.bf16.mxu0 0
    %258 = vmatpush1.bf16.msra.mxu0 %v241
    %259 = vmatprep.subr.bf16.mxu0 0
    %260 = vmatpush1.bf16.msra.mxu0 %v242
    %261 = vmatprep.subr.bf16.mxu0 0
    %262 = vmatpush1.bf16.msra.mxu0 %v243
    %263 = vmatprep.subr.bf16.mxu0 0
    %264 = vmatpush1.bf16.msra.mxu0 %v244
    %265 = vmatprep.subr.bf16.mxu0 0
    %266 = vmatpush1.bf16.msra.mxu0 %v245
    %267 = vmatprep.subr.bf16.mxu0 0
    %268 = vmatpush1.bf16.msra.mxu0 %v246
    %269 = vmatprep.subr.bf16.mxu0 0
    %270 = vmatpush1.bf16.msra.mxu0 %v247
    %271 = vmatprep.subr.bf16.mxu0 0
    %272 = vmatpush1.bf16.msra.mxu0 %v248
    %273 = vmatprep.subr.bf16.mxu0 0
    %274 = vmatpush1.bf16.msra.mxu0 0
    %275 = vmatprep.subr.bf16.mxu0 0
    %276 = vmatpush1.bf16.msra.mxu0 0
    %277 = vmatprep.subr.bf16.mxu0 0
    %278 = vmatpush1.bf16.msra.mxu0 0
    %279 = vmatprep.subr.bf16.mxu0 0
    %280 = vmatpush1.bf16.msra.mxu0 0
    %281 = vmatprep.subr.bf16.mxu0 0
    %282 = vmatpush1.bf16.msra.mxu0 0
    %283 = vmatprep.subr.bf16.mxu0 0
    %284 = vmatpush1.bf16.msra.mxu0 0
    %285 = vmatprep.subr.bf16.mxu0 0
    %286 = vmatpush1.bf16.msra.mxu0 0
    %287 = vmatprep.subr.bf16.mxu0 0
    %288 = vmatpush1.bf16.msra.mxu0 0
    %289 = vmatprep.mubr.bf16.mxu0 0
    %290 = vmatmul.mubr.bf16.gmra.mrb[0].mxu0 %v187
    %v291 = vpop.f32.mrb[0].mxu0
    %v292 = vadd.f32 %v208, %v291
    %v293 = vpop.f32.mrb[0].mxu0
    %v294 = vpop.f32.mrb[0].mxu0
    %v295 = vpop.f32.mrb[0].mxu0
    %296 = vdwg.mxu0
    %v297 = vmax.f32 %v292, 0.0
    %v298 = vpack.c.bf16 %v297, %v297
    %v299 = vld [vmem:[%s3 + $0x40] sm:$0xf]
    %v300 = vld [vmem:[%s3 + $0x44] sm:$0xf]
    %v301 = vld [vmem:[%s3 + $0x48] sm:$0xf]
    %v302 = vld [vmem:[%s3 + $0x4c] sm:$0xf]
    %v303 = vld [vmem:[%s3 + $0x50] sm:$0xf]
    %v304 = vld [vmem:[%s3 + $0x54] sm:$0xf]
    %v305 = vld [vmem:[%s3 + $0x58] sm:$0xf]
    %v306 = vld [vmem:[%s3 + $0x5c] sm:$0xf]
    %v307 = vld [vmem:[%s3 + $0x60] sm:$0xf]
    %v308 = vld [vmem:[%s3 + $0x64] sm:$0xf]
    %v309 = vld [vmem:[%s3 + $0x68] sm:$0xf]
    %v310 = vld [vmem:[%s3 + $0x6c] sm:$0xf]
    %v311 = vld [vmem:[%s3 + $0x70] sm:$0xf]
    %v312 = vld [vmem:[%s3 + $0x74] sm:$0xf]
    %v313 = vld [vmem:[%s3 + $0x78] sm:$0xf]
    %v314 = vld [vmem:[%s3 + $0x7c] sm:$0xf]
    %v315 = vld [vmem:[%s4] sm:$0xff]
    %v316 = vld [vmem:[%s4 + $0x8] sm:$0xff]
    %v317 = vld [vmem:[%s4 + $0x10] sm:$0xff]
    %v318 = vld [vmem:[%s4 + $0x18] sm:$0xff]
    %v319 = vld [vmem:[%s4 + $0x20] sm:$0xff]
    %v320 = vld [vmem:[%s4 + $0x28] sm:$0xff]
    %v321 = vld [vmem:[%s4 + $0x30] sm:$0xff]
    %v322 = vld [vmem:[%s4 + $0x38] sm:$0xff]
    %v323 = vld [vmem:[%s4 + $0x40] sm:$0xff]
    %v324 = vld [vmem:[%s4 + $0x48] sm:$0xff]
    %v325 = vld [vmem:[%s4 + $0x50] sm:$0xff]
    %v326 = vld [vmem:[%s4 + $0x58] sm:$0xff]
    %v327 = vld [vmem:[%s4 + $0x60] sm:$0xff]
    %v328 = vld [vmem:[%s4 + $0x68] sm:$0xff]
    %v329 = vld [vmem:[%s4 + $0x70] sm:$0xff]
    %v330 = vld [vmem:[%s4 + $0x78] sm:$0xff]
    %332 = vset.pattern.permute.xlu0 0
    %333 = vperm.xlu0 %332, %v315
    %v334 = vpop.permute.xlu0 %333
    %337 = vset.pattern.permute.xlu0 0
    %338 = vperm.xlu0 %337, %v316
    %v339 = vpop.permute.xlu0 %338
    %342 = vset.pattern.permute.xlu0 0
    %343 = vperm.xlu0 %342, %v317
    %v344 = vpop.permute.xlu0 %343
    %347 = vset.pattern.permute.xlu0 0
    %348 = vperm.xlu0 %347, %v318
    %v349 = vpop.permute.xlu0 %348
    %352 = vset.pattern.permute.xlu0 0
    %353 = vperm.xlu0 %352, %v319
    %v354 = vpop.permute.xlu0 %353
    %357 = vset.pattern.permute.xlu0 0
    %358 = vperm.xlu0 %357, %v320
    %v359 = vpop.permute.xlu0 %358
    %362 = vset.pattern.permute.xlu0 0
    %363 = vperm.xlu0 %362, %v321
    %v364 = vpop.permute.xlu0 %363
    %367 = vset.pattern.permute.xlu0 0
    %368 = vperm.xlu0 %367, %v322
    %v369 = vpop.permute.xlu0 %368
    %372 = vset.pattern.permute.xlu0 0
    %373 = vperm.xlu0 %372, %v323
    %v374 = vpop.permute.xlu0 %373
    %377 = vset.pattern.permute.xlu0 0
    %378 = vperm.xlu0 %377, %v324
    %v379 = vpop.permute.xlu0 %378
    %382 = vset.pattern.permute.xlu0 0
    %383 = vperm.xlu0 %382, %v325
    %v384 = vpop.permute.xlu0 %383
    %387 = vset.pattern.permute.xlu0 0
    %388 = vperm.xlu0 %387, %v326
    %v389 = vpop.permute.xlu0 %388
    %392 = vset.pattern.permute.xlu0 0
    %393 = vperm.xlu0 %392, %v327
    %v394 = vpop.permute.xlu0 %393
    %397 = vset.pattern.permute.xlu0 0
    %398 = vperm.xlu0 %397, %v328
    %v399 = vpop.permute.xlu0 %398
    %402 = vset.pattern.permute.xlu0 0
    %403 = vperm.xlu0 %402, %v329
    %v404 = vpop.permute.xlu0 %403
    %407 = vset.pattern.permute.xlu0 0
    %408 = vperm.xlu0 %407, %v330
    %v409 = vpop.permute.xlu0 %408
    %v427 = vunpack.c.l.b16 %v299
    %v428 = vunpack.c.l.b16 %v300
    %v429 = vunpack.c.l.b16 %v301
    %v430 = vunpack.c.l.b16 %v302
    %v431 = vunpack.c.l.b16 %v303
    %v432 = vunpack.c.l.b16 %v304
    %v433 = vunpack.c.l.b16 %v305
    %v434 = vunpack.c.l.b16 %v306
    %v435 = vunpack.c.l.b16 %v307
    %v436 = vunpack.c.l.b16 %v308
    %v437 = vunpack.c.l.b16 %v309
    %v438 = vunpack.c.l.b16 %v310
    %v439 = vunpack.c.l.b16 %v311
    %v440 = vunpack.c.l.b16 %v312
    %v441 = vunpack.c.l.b16 %v313
    %v442 = vunpack.c.l.b16 %v314
    %v443 = vpack.c.b16 %v428, %v427
    %v444 = vpack.c.b16 %v430, %v429
    %v445 = vpack.c.b16 %v432, %v431
    %v446 = vpack.c.b16 %v434, %v433
    %v447 = vpack.c.b16 %v436, %v435
    %v448 = vpack.c.b16 %v438, %v437
    %v449 = vpack.c.b16 %v440, %v439
    %v450 = vpack.c.b16 %v442, %v441
    %459 = vmatprep.subr.bf16.mxu0 0
    %460 = vmatpush1.bf16.xpose.msra.mxu0 %v298
    %461 = vmatprep.subr.bf16.mxu0 0
    %462 = vmatpush1.bf16.xpose.msra.mxu0 0
    %463 = vmatprep.subr.bf16.mxu0 0
    %464 = vmatpush1.bf16.xpose.msra.mxu0 0
    %465 = vmatprep.subr.bf16.mxu0 0
    %466 = vmatpush1.bf16.xpose.msra.mxu0 0
    %467 = vmatprep.subr.bf16.mxu0 0
    %468 = vmatpush1.bf16.xpose.msra.mxu0 0
    %469 = vmatprep.subr.bf16.mxu0 0
    %470 = vmatpush1.bf16.xpose.msra.mxu0 0
    %471 = vmatprep.subr.bf16.mxu0 0
    %472 = vmatpush1.bf16.xpose.msra.mxu0 0
    %473 = vmatprep.subr.bf16.mxu0 0
    %474 = vmatpush1.bf16.xpose.msra.mxu0 0
    %475 = vmatprep.subr.bf16.mxu0 0
    %476 = vmatpush1.bf16.xpose.msra.mxu0 0
    %477 = vmatprep.subr.bf16.mxu0 0
    %478 = vmatpush1.bf16.xpose.msra.mxu0 0
    %479 = vmatprep.subr.bf16.mxu0 0
    %480 = vmatpush1.bf16.xpose.msra.mxu0 0
    %481 = vmatprep.subr.bf16.mxu0 0
    %482 = vmatpush1.bf16.xpose.msra.mxu0 0
    %483 = vmatprep.subr.bf16.mxu0 0
    %484 = vmatpush1.bf16.xpose.msra.mxu0 0
    %485 = vmatprep.subr.bf16.mxu0 0
    %486 = vmatpush1.bf16.xpose.msra.mxu0 0
    %487 = vmatprep.subr.bf16.mxu0 0
    %488 = vmatpush1.bf16.xpose.msra.mxu0 0
    %489 = vmatprep.subr.bf16.mxu0 0
    %490 = vmatpush1.bf16.xpose.msra.mxu0 0
    %491 = vmatprep.mubr.bf16.mxu0 0
    %492 = vmatmul.mubr.bf16.gmra.mrb[0].mxu0 %v443
    %v493 = vpop.f32.mrb[0].mxu0
    %v494 = vadd.f32 %v334, %v493
    %v495 = vpop.f32.mrb[0].mxu0
    %v496 = vpop.f32.mrb[0].mxu0
    %v497 = vadd.f32 %v339, %v496
    %v498 = vpop.f32.mrb[0].mxu0
    %499 = vmatprep.mubr.bf16.mxu0 0
    %500 = vmatmul.mubr.bf16.gmra.mrb[0].mxu0 %v444
    %v501 = vpop.f32.mrb[0].mxu0
    %v502 = vadd.f32 %v344, %v501
    %v503 = vpop.f32.mrb[0].mxu0
    %v504 = vpop.f32.mrb[0].mxu0
    %v505 = vadd.f32 %v349, %v504
    %v506 = vpop.f32.mrb[0].mxu0
    %507 = vmatprep.mubr.bf16.mxu0 0
    %508 = vmatmul.mubr.bf16.gmra.mrb[0].mxu0 %v445
    %v509 = vpop.f32.mrb[0].mxu0
    %v510 = vadd.f32 %v354, %v509
    %v511 = vpop.f32.mrb[0].mxu0
    %v512 = vpop.f32.mrb[0].mxu0
    %v513 = vadd.f32 %v359, %v512
    %v514 = vpop.f32.mrb[0].mxu0
    %515 = vmatprep.mubr.bf16.mxu0 0
    %516 = vmatmul.mubr.bf16.gmra.mrb[0].mxu0 %v446
    %v517 = vpop.f32.mrb[0].mxu0
    %v518 = vadd.f32 %v364, %v517
    %v519 = vpop.f32.mrb[0].mxu0
    %v520 = vpop.f32.mrb[0].mxu0
    %v521 = vadd.f32 %v369, %v520
    %v522 = vpop.f32.mrb[0].mxu0
    %523 = vmatprep.mubr.bf16.mxu0 0
    %524 = vmatmul.mubr.bf16.gmra.mrb[0].mxu0 %v447
    %v525 = vpop.f32.mrb[0].mxu0
    %v526 = vadd.f32 %v374, %v525
    %v527 = vpop.f32.mrb[0].mxu0
    %v528 = vpop.f32.mrb[0].mxu0
    %v529 = vadd.f32 %v379, %v528
    %v530 = vpop.f32.mrb[0].mxu0
    %531 = vmatprep.mubr.bf16.mxu0 0
    %532 = vmatmul.mubr.bf16.gmra.mrb[0].mxu0 %v448
    %v533 = vpop.f32.mrb[0].mxu0
    %v534 = vadd.f32 %v384, %v533
    %v535 = vpop.f32.mrb[0].mxu0
    %v536 = vpop.f32.mrb[0].mxu0
    %v537 = vadd.f32 %v389, %v536
    %v538 = vpop.f32.mrb[0].mxu0
    %539 = vmatprep.mubr.bf16.mxu0 0
    %540 = vmatmul.mubr.bf16.gmra.mrb[0].mxu0 %v449
    %v541 = vpop.f32.mrb[0].mxu0
    %v542 = vadd.f32 %v394, %v541
    %v543 = vpop.f32.mrb[0].mxu0
    %v544 = vpop.f32.mrb[0].mxu0
    %v545 = vadd.f32 %v399, %v544
    %v546 = vpop.f32.mrb[0].mxu0
    %547 = vmatprep.mubr.bf16.mxu0 0
    %548 = vmatmul.mubr.bf16.gmra.mrb[0].mxu0 %v450
    %v549 = vpop.f32.mrb[0].mxu0
    %v550 = vadd.f32 %v404, %v549
    %v551 = vpop.f32.mrb[0].mxu0
    %v552 = vpop.f32.mrb[0].mxu0
    %v553 = vadd.f32 %v409, %v552
    %v554 = vpop.f32.mrb[0].mxu0
    %555 = vdwg.mxu0
    %v556 = vmax.f32 %v494, 0.0
    %v557 = vmax.f32 %v497, 0.0
    %v558 = vmax.f32 %v502, 0.0
    %v559 = vmax.f32 %v505, 0.0
    %v560 = vmax.f32 %v510, 0.0
    %v561 = vmax.f32 %v513, 0.0
    %v562 = vmax.f32 %v518, 0.0
    %v563 = vmax.f32 %v521, 0.0
    %v564 = vmax.f32 %v526, 0.0
    %v565 = vmax.f32 %v529, 0.0
    %v566 = vmax.f32 %v534, 0.0
    %v567 = vmax.f32 %v537, 0.0
    %v568 = vmax.f32 %v542, 0.0
    %v569 = vmax.f32 %v545, 0.0
    %v570 = vmax.f32 %v550, 0.0
    %v571 = vmax.f32 %v553, 0.0
    %v572 = vpack.c.bf16 %v557, %v556
    %v573 = vpack.c.bf16 %v559, %v558
    %v574 = vpack.c.bf16 %v561, %v560
    %v575 = vpack.c.bf16 %v563, %v562
    %v576 = vpack.c.bf16 %v565, %v564
    %v577 = vpack.c.bf16 %v567, %v566
    %v578 = vpack.c.bf16 %v569, %v568
    %v579 = vpack.c.bf16 %v571, %v570
    %v580 = vld [vmem:[%s3 + $0x80] sm:$0xf]
    %v581 = vld [vmem:[%s3 + $0x84] sm:$0xf]
    %v584 = vunpack.c.l.b16 %v580
    %v585 = vunpack.c.l.b16 %v581
    %v586 = vpack.c.b16 %v585, %v584
    %588 = vmatprep.subr.bf16.mxu0 0
    %589 = vmatpush1.bf16.msra.mxu0 %v572
    %590 = vmatprep.subr.bf16.mxu0 0
    %591 = vmatpush1.bf16.msra.mxu0 %v573
    %592 = vmatprep.subr.bf16.mxu0 0
    %593 = vmatpush1.bf16.msra.mxu0 %v574
    %594 = vmatprep.subr.bf16.mxu0 0
    %595 = vmatpush1.bf16.msra.mxu0 %v575
    %596 = vmatprep.subr.bf16.mxu0 0
    %597 = vmatpush1.bf16.msra.mxu0 %v576
    %598 = vmatprep.subr.bf16.mxu0 0
    %599 = vmatpush1.bf16.msra.mxu0 %v577
    %600 = vmatprep.subr.bf16.mxu0 0
    %601 = vmatpush1.bf16.msra.mxu0 %v578
    %602 = vmatprep.subr.bf16.mxu0 0
    %603 = vmatpush1.bf16.msra.mxu0 %v579
    %604 = vmatprep.subr.bf16.mxu0 0
    %605 = vmatpush1.bf16.msra.mxu0 0
    %606 = vmatprep.subr.bf16.mxu0 0
    %607 = vmatpush1.bf16.msra.mxu0 0
    %608 = vmatprep.subr.bf16.mxu0 0
    %609 = vmatpush1.bf16.msra.mxu0 0
    %610 = vmatprep.subr.bf16.mxu0 0
    %611 = vmatpush1.bf16.msra.mxu0 0
    %612 = vmatprep.subr.bf16.mxu0 0
    %613 = vmatpush1.bf16.msra.mxu0 0
    %614 = vmatprep.subr.bf16.mxu0 0
    %615 = vmatpush1.bf16.msra.mxu0 0
    %616 = vmatprep.subr.bf16.mxu0 0
    %617 = vmatpush1.bf16.msra.mxu0 0
    %618 = vmatprep.subr.bf16.mxu0 0
    %619 = vmatpush1.bf16.msra.mxu0 0
    %620 = vmatprep.mubr.bf16.mxu0 0
    %621 = vmatmul.mubr.bf16.gmra.mrb[0].mxu0 %v586
    %v622 = vpop.f32.mrb[0].mxu0
    %v623 = vadd.f32 0.0, %v622
    %v624 = vpop.f32.mrb[0].mxu0
    %v625 = vpop.f32.mrb[0].mxu0
    %v626 = vpop.f32.mrb[0].mxu0
    %627 = vdwg.mxu0
    %v628 = vtanh.pop %v623
    %vm629 = vcmask 64512
    %630 = vst.msk [vmem:[#allocation2] sm:$0xff] %vm629, %v628
    // Predicated region
    $region22: #{tpu_custom_call.1} parent=1 // pred_check
      _
    $region23: #{tpu_custom_call.1} parent=1 // pred_check_branch
      %632 = sbr.rel (0) target = $region25
    $region24: #{tpu_custom_call.1} parent=1 // pred_region
      %s634 = ssub.s32 128, 128
      %635 = vsyncadd [#allocation3], %s634
      %s637 = sshll.u32 [#allocation2], 4
      %s638 = int_to_ptr.vmem [resolvable:$true] %s637
      %640 = dma.vmem_to_hbm [thread:$0]  %s638, 128, %s5, [#allocation3]
    $region25: #{tpu_custom_call.1} parent=1 // pred_fallthru
      _
    // Predicated region
    $region26: #{tpu_custom_call.1} parent=1 // pred_check
      _
    $region27: #{tpu_custom_call.1} parent=1 // pred_check_branch
      %642 = sbr.rel (0) target = $region29
    $region28: #{tpu_custom_call.1} parent=1 // pred_region
      %643 = dma.done [#allocation3], 128
    $region29: #{tpu_custom_call.1} parent=1 // pred_fallthru
      _
    %644 = vsyncpa [#allocation3], 1

</llo_original>
